<compile_context>
chip_gen: v5e
topology: v5e:2x2
jax: 0.10.0
libtpu: 0.0.40
codegen_flags: <defaults>
</compile_context>

<pallas_src>
import functools
import math
import numbers

import jax
import jax.numpy as jnp
from jax.experimental import pallas as pl
from jax.experimental.pallas import tpu as pltpu


# ----------------------------- weight construction -----------------------------

def _gaussian_taps_1d(size, sigma):
    """Normalized 1-D Gaussian taps as compile-time Python floats."""
    mean = (size - 1) / 2.0
    t = [
        math.exp(-(((i - mean) / sigma) ** 2) / 2.0) / (sigma * math.sqrt(2.0 * math.pi))
        for i in range(size)
    ]
    s = sum(t)
    return tuple(v / s for v in t)


def make_gaussian_taps(kernel_size, sigma, dim=2):
    """Separable 1-D taps; outer(ky, kx) equals the module's normalized 2-D kernel
    (normalization factorizes because the 2-D kernel is an outer product)."""
    if isinstance(kernel_size, numbers.Number):
        kernel_size = [kernel_size] * dim
    if isinstance(sigma, numbers.Number):
        sigma = [sigma] * dim
    assert dim == 2, "only dim=2 implemented here"
    ky = _gaussian_taps_1d(kernel_size[0], sigma[0])
    kx = _gaussian_taps_1d(kernel_size[1], sigma[1])
    return ky, kx


def make_gaussian_weight(channels, kernel_size, sigma, dim=2, dtype=jnp.float32):
    """Replicates GaussianSmoothing.__init__ 2-D weight exactly (for the reference)."""
    if isinstance(kernel_size, numbers.Number):
        kernel_size = [kernel_size] * dim
    if isinstance(sigma, numbers.Number):
        sigma = [sigma] * dim
    grids = jnp.meshgrid(
        *[jnp.arange(size, dtype=jnp.float32) for size in kernel_size], indexing="ij"
    )
    kernel = jnp.ones([], dtype=jnp.float32)
    for size, std, mgrid in zip(kernel_size, sigma, grids):
        mean = (size - 1) / 2.0
        kernel = kernel * (
            1.0 / (std * math.sqrt(2.0 * math.pi))
            * jnp.exp(-(((mgrid - mean) / std) ** 2) / 2.0)
        )
    kernel = kernel / jnp.sum(kernel)
    weight = jnp.broadcast_to(kernel[None, :, :], (channels,) + kernel.shape)
    return weight.astype(dtype)


# ---------------------------------- kernel -------------------------------------

def _smooth_kernel(x_ref, o_ref, hs_ref, *, kys, kxs, oh, ow, rs):
    # x_ref:  (c_blk, H,  W )  input channel batch for this grid step
    # o_ref:  (c_blk, OH, OW)  valid-conv output, written directly (no padding)
    # hs_ref: (c_blk, rs+kh-1, OW) f32 VMEM scratch: per-strip horizontal result
    kh, kw = len(kys), len(kxs)
    rows_in = rs + kh - 1
    n_strips = -(-oh // rs)  # static Python int

    for s in range(n_strips):
        # Last strip overlaps the previous one instead of going out of bounds;
        # the overlapping output rows are simply re-written with identical values.
        r0 = min(s * rs, oh - rs)

        # Horizontal (lane-direction) pass: kw taps as per-tap *ref* loads at
        # static lane offsets (no block-sized SSA value slicing).
        h = kxs[0] * x_ref[:, pl.ds(r0, rows_in), pl.ds(0, ow)].astype(jnp.float32)
        for j in range(1, kw):
            h = h + kxs[j] * x_ref[:, pl.ds(r0, rows_in), pl.ds(j, ow)].astype(jnp.float32)
        hs_ref[...] = h

        # Vertical (sublane-direction) pass: kh taps as ref loads at row offsets.
        acc = kys[0] * hs_ref[:, pl.ds(0, rs), :]
        for i in range(1, kh):
            acc = acc + kys[i] * hs_ref[:, pl.ds(i, rs), :]

        o_ref[:, pl.ds(r0, rs), :] = acc.astype(o_ref.dtype)


def _choose_channel_block(nc, per_channel_bytes, target_bytes=1 << 20, min_steps=8):
    """Channel-batch size: blocks ~target_bytes, but keep >= min_steps grid steps
    so the BlockSpec pipeline has work to overlap (v7x has 2 TensorCores)."""
    cap_bytes = max(1, target_bytes // max(1, per_channel_bytes))
    cap_steps = max(1, -(-nc // min_steps))
    return max(1, min(nc, cap_bytes, cap_steps))


def gaussian_smoothing_2d(x, ky, kx, *, row_strip=16):
    """
    x:  (N, C, H, W)
    ky: (KH,) vertical taps, kx: (KW,) horizontal taps (shared by all channels,
        compile-time Python floats)
    returns (N, C, H-KH+1, W-KW+1)  -- valid conv, matches F.conv2d(groups=C)
    """
    N, C, H, W = x.shape
    kh, kw = len(ky), len(kx)
    assert H >= kh and W >= kw, "input smaller than kernel (valid conv)"
    oh, ow = H - kh + 1, W - kw + 1
    rs = min(row_strip, oh)

    nc = N * C
    xr = x.reshape(nc, H, W)  # metadata-only reshape, no HBM traffic

    itemsize = x.dtype.itemsize
    c_blk = _choose_channel_block(nc, H * W * itemsize)
    grid = (pl.cdiv(nc, c_blk),)  # partial last block is fine (channels independent)

    in_block_bytes = c_blk * H * W * itemsize
    out_block_bytes = c_blk * oh * ow * itemsize
    scratch_bytes = c_blk * (rs + kh - 1) * ow * 4
    vmem_limit = int(
        min(64 << 20,
            max(16 << 20,
                2 * (in_block_bytes + out_block_bytes) + scratch_bytes + (8 << 20)))
    )

    kernel = functools.partial(
        _smooth_kernel, kys=tuple(ky), kxs=tuple(kx), oh=oh, ow=ow, rs=rs
    )

    out = pl.pallas_call(
        kernel,
        out_shape=jax.ShapeDtypeStruct((nc, oh, ow), x.dtype),
        grid_spec=pltpu.PrefetchScalarGridSpec(
            num_scalar_prefetch=0,
            grid=grid,
            in_specs=[pl.BlockSpec((c_blk, H, W), lambda i: (i, 0, 0))],
            out_specs=pl.BlockSpec((c_blk, oh, ow), lambda i: (i, 0, 0)),
            scratch_shapes=[pltpu.VMEM((c_blk, rs + kh - 1, ow), jnp.float32)],
        ),
        compiler_params=pltpu.CompilerParams(
            dimension_semantics=("parallel",),
            vmem_limit_bytes=vmem_limit,
        ),
    )(xr)

    return out.reshape(N, C, oh, ow)


# --------------------------------- reference ------------------------------------

def _reference(x, weight):
    """Pure-JAX reference: depthwise valid conv (groups = channels)."""
    C = x.shape[1]
    w = weight[:, None, :, :]  # (C, 1, K, K) = OIHW with I=1 per group
    return jax.lax.conv_general_dilated(
        x, w,
        window_strides=(1, 1),
        padding="VALID",
        dimension_numbers=("NCHW", "OIHW", "NCHW"),
        feature_group_count=C,
        precision=jax.lax.Precision.HIGHEST,
    )


if __name__ == "__main__":
    key = jax.random.PRNGKey(0)
    N, C, H, W = 2, 4, 16, 16
    kernel_size, sigma = 5, 1.0

    x = jax.random.normal(key, (N, C, H, W), dtype=jnp.float32)

    ky, kx = make_gaussian_taps(kernel_size, sigma, dim=2)       # separable taps
    weight = make_gaussian_weight(C, kernel_size, sigma, dim=2)  # exact module weight

    out = gaussian_smoothing_2d(x, ky, kx)
    out = jax.block_until_ready(out)

    ref = jax.block_until_ready(_reference(x, weight))
    assert out.shape == (N, C, H - kernel_size + 1, W - kernel_size + 1)
    assert jnp.allclose(out, ref, atol=1e-5, rtol=1e-5)

    print("KERNEL_OK")
</pallas_src>

<mosaic_0001>
module attributes {stable_mosaic.version = 11 : i64} {
  func.func @_smooth_kernel(%arg0: i32, %arg1: memref<1x16x16xf32, #tpu.memory_space<vmem>>, %arg2: memref<1x12x12xf32, #tpu.memory_space<vmem>>, %arg3: memref<1x16x12xf32, #tpu.memory_space<vmem>>) attributes {dimension_semantics = [#tpu.dimension_semantics<parallel>], iteration_bounds = array<i64: 8>, scalar_prefetch = 0 : i64, scratch_operands = 1 : i64, tpu.core_type = #tpu.core_type<tc>, window_params = [{transform_indices = @transform_0, window_bounds = array<i64: 1, 16, 16>}, {transform_indices = @transform_1, window_bounds = array<i64: 1, 12, 12>}]} {
    %c0 = arith.constant 0 : index
    %c0_0 = arith.constant 0 : index
    %c0_1 = arith.constant 0 : index
    %0 = vector.load %arg1[%c0, %c0_0, %c0_1] : memref<1x16x16xf32, #tpu.memory_space<vmem>>, vector<1x16x12xf32>
    %cst = arith.constant 0.054488685 : f32
    %1 = vector.broadcast %cst : f32 to vector<1x16x12xf32>
    %2 = arith.mulf %1, %0 : vector<1x16x12xf32>
    %c0_2 = arith.constant 0 : index
    %c0_3 = arith.constant 0 : index
    %c1 = arith.constant 1 : index
    %3 = vector.load %arg1[%c0_2, %c0_3, %c1] : memref<1x16x16xf32, #tpu.memory_space<vmem>>, vector<1x16x12xf32>
    %cst_4 = arith.constant 0.244201347 : f32
    %4 = vector.broadcast %cst_4 : f32 to vector<1x16x12xf32>
    %5 = arith.mulf %4, %3 : vector<1x16x12xf32>
    %6 = arith.addf %2, %5 : vector<1x16x12xf32>
    %c0_5 = arith.constant 0 : index
    %c0_6 = arith.constant 0 : index
    %c2 = arith.constant 2 : index
    %7 = vector.load %arg1[%c0_5, %c0_6, %c2] : memref<1x16x16xf32, #tpu.memory_space<vmem>>, vector<1x16x12xf32>
    %cst_7 = arith.constant 0.402619958 : f32
    %8 = vector.broadcast %cst_7 : f32 to vector<1x16x12xf32>
    %9 = arith.mulf %8, %7 : vector<1x16x12xf32>
    %10 = arith.addf %6, %9 : vector<1x16x12xf32>
    %c0_8 = arith.constant 0 : index
    %c0_9 = arith.constant 0 : index
    %c3 = arith.constant 3 : index
    %11 = vector.load %arg1[%c0_8, %c0_9, %c3] : memref<1x16x16xf32, #tpu.memory_space<vmem>>, vector<1x16x12xf32>
    %cst_10 = arith.constant 0.244201347 : f32
    %12 = vector.broadcast %cst_10 : f32 to vector<1x16x12xf32>
    %13 = arith.mulf %12, %11 : vector<1x16x12xf32>
    %14 = arith.addf %10, %13 : vector<1x16x12xf32>
    %c0_11 = arith.constant 0 : index
    %c0_12 = arith.constant 0 : index
    %c4 = arith.constant 4 : index
    %15 = vector.load %arg1[%c0_11, %c0_12, %c4] : memref<1x16x16xf32, #tpu.memory_space<vmem>>, vector<1x16x12xf32>
    %cst_13 = arith.constant 0.054488685 : f32
    %16 = vector.broadcast %cst_13 : f32 to vector<1x16x12xf32>
    %17 = arith.mulf %16, %15 : vector<1x16x12xf32>
    %18 = arith.addf %14, %17 : vector<1x16x12xf32>
    %c0_14 = arith.constant 0 : index
    %c0_15 = arith.constant 0 : index
    %c0_16 = arith.constant 0 : index
    %19 = vector.load %arg3[%c0_14, %c0_15, %c0_16] : memref<1x16x12xf32, #tpu.memory_space<vmem>>, vector<1x16x12xf32>
    tpu.vector_store %arg3[%c0_14, %c0_15, %c0_16], %18 {strides = array<i32>} : memref<1x16x12xf32, #tpu.memory_space<vmem>>, vector<1x16x12xf32>,
    %c0_17 = arith.constant 0 : index
    %c0_18 = arith.constant 0 : index
    %c0_19 = arith.constant 0 : index
    %20 = vector.load %arg3[%c0_17, %c0_18, %c0_19] : memref<1x16x12xf32, #tpu.memory_space<vmem>>, vector<1x12x12xf32>
    %cst_20 = arith.constant 0.054488685 : f32
    %21 = vector.broadcast %cst_20 : f32 to vector<1x12x12xf32>
    %22 = arith.mulf %21, %20 : vector<1x12x12xf32>
    %c0_21 = arith.constant 0 : index
    %c1_22 = arith.constant 1 : index
    %c0_23 = arith.constant 0 : index
    %23 = vector.load %arg3[%c0_21, %c1_22, %c0_23] : memref<1x16x12xf32, #tpu.memory_space<vmem>>, vector<1x12x12xf32>
    %cst_24 = arith.constant 0.244201347 : f32
    %24 = vector.broadcast %cst_24 : f32 to vector<1x12x12xf32>
    %25 = arith.mulf %24, %23 : vector<1x12x12xf32>
    %26 = arith.addf %22, %25 : vector<1x12x12xf32>
    %c0_25 = arith.constant 0 : index
    %c2_26 = arith.constant 2 : index
    %c0_27 = arith.constant 0 : index
    %27 = vector.load %arg3[%c0_25, %c2_26, %c0_27] : memref<1x16x12xf32, #tpu.memory_space<vmem>>, vector<1x12x12xf32>
    %cst_28 = arith.constant 0.402619958 : f32
    %28 = vector.broadcast %cst_28 : f32 to vector<1x12x12xf32>
    %29 = arith.mulf %28, %27 : vector<1x12x12xf32>
    %30 = arith.addf %26, %29 : vector<1x12x12xf32>
    %c0_29 = arith.constant 0 : index
    %c3_30 = arith.constant 3 : index
    %c0_31 = arith.constant 0 : index
    %31 = vector.load %arg3[%c0_29, %c3_30, %c0_31] : memref<1x16x12xf32, #tpu.memory_space<vmem>>, vector<1x12x12xf32>
    %cst_32 = arith.constant 0.244201347 : f32
    %32 = vector.broadcast %cst_32 : f32 to vector<1x12x12xf32>
    %33 = arith.mulf %32, %31 : vector<1x12x12xf32>
    %34 = arith.addf %30, %33 : vector<1x12x12xf32>
    %c0_33 = arith.constant 0 : index
    %c4_34 = arith.constant 4 : index
    %c0_35 = arith.constant 0 : index
    %35 = vector.load %arg3[%c0_33, %c4_34, %c0_35] : memref<1x16x12xf32, #tpu.memory_space<vmem>>, vector<1x12x12xf32>
    %cst_36 = arith.constant 0.054488685 : f32
    %36 = vector.broadcast %cst_36 : f32 to vector<1x12x12xf32>
    %37 = arith.mulf %36, %35 : vector<1x12x12xf32>
    %38 = arith.addf %34, %37 : vector<1x12x12xf32>
    %c0_37 = arith.constant 0 : index
    %c0_38 = arith.constant 0 : index
    %c0_39 = arith.constant 0 : index
    %39 = vector.load %arg2[%c0_37, %c0_38, %c0_39] : memref<1x12x12xf32, #tpu.memory_space<vmem>>, vector<1x12x12xf32>
    tpu.vector_store %arg2[%c0_37, %c0_38, %c0_39], %38 {strides = array<i32>} : memref<1x12x12xf32, #tpu.memory_space<vmem>>, vector<1x12x12xf32>,
    return
  }
  func.func @transform_0(%arg0: i32) -> (i32, i32, i32) {
    %c0_i32 = arith.constant 0 : i32
    %c0_i32_0 = arith.constant 0 : i32
    %c0_i32_1 = arith.constant 0 : i32
    return %arg0, %c0_i32, %c0_i32_0 : i32, i32, i32
  }
  func.func @transform_1(%arg0: i32) -> (i32, i32, i32) {
    %c0_i32 = arith.constant 0 : i32
    %c0_i32_0 = arith.constant 0 : i32
    %c0_i32_1 = arith.constant 0 : i32
    return %arg0, %c0_i32, %c0_i32_0 : i32, i32, i32
  }
}

</mosaic_0001>

<llo_original>
// kernel: tpu_custom_call.1
$region0: #{tpu_custom_call.1}
  #allocation0 [shape = 'u32[]', space=smem, size = 0x4, offset = 0x4, fixed_abs, tag = 'smem constant byte address 0x4 - core index']
  #allocation1 [shape = 'u32[72,128]{1,0:T(1,128)}', space=vmem, size = 0x9000, scoped, tag = 'internal scratch']
  #allocation2 [shape = 'f32[1,16,12]{2,1,0:T(8,128)}', space=vmem, size = 0x2000, scoped, tag = 'scratch operand']
  %s0 = inlined_call_operand.hbm [shape: f32[8,16,16], index: 0, kind: input, shape index: {}]
  %s1 = inlined_call_operand.vmem [shape: f32[8,12,12], index: 1, kind: output, shape index: {}]
  %s2 = sld [smem:[#allocation0]]
  $region41: #{tpu_custom_call.1} parent=0
    _
  %s4 = ssub.s32 1, %s2
  %s5 = scalar_select 0, %s4, %s2
  $region1: #{tpu_custom_call.1} parent=0
    #allocation3 [shape = 'u8[16384]{0}', space=vmem, size = 0x4000, scoped, tag = 'input window, operand 0']
    #allocation4 [shape = 's32[2]{0}', space=sflag, size = 0x8, scoped, tag = 'scoped memory for tpu_custom_call.1']
    %6 = vsyncpa [#allocation4], 0
    %s7 = scalar_lea.sflag [#allocation4], 1
    %8 = vsyncpa %s7, 0
    loop: start=0, step=1, limit=10
    $region2: #{tpu_custom_call.1} parent=1 // loop_pre_header
      _
    $region3: #{tpu_custom_call.1} parent=1 // loop_header
      %s10 = sphi 0, %s14
      %p11 = scmp.ge.s32.totalorder %s10, 10
      %s20 = sphi 0, %s22
      %s23 = sphi 0, %s20
      %s24 = sphi 0, %s23
      %s40 = sphi 0, %s24
      %s46 = sphi 0, %s48
      %s49 = sphi 0, %s46
      %s50 = sphi 0, %s49
      %s66 = sphi 0, %s50
    $region4: #{tpu_custom_call.1} parent=1 // loop_header_branch
      %13 = sbr.rel (%p11) target = $region8
    $region5: #{tpu_custom_call.1} parent=1 // loop_body
      %s15 = ssub.s32 %s10, 1
      %s16 = ssub.s32 %s10, 2
      %s17 = sadd.s32 %s10, 1
      %s18 = ssub.s32 %s10, %s17
      %p19 = scmp.eq.s32.totalorder %s18, 0
      %s21 = sadd.s32 %s20, 1
      %s22 = scalar_select %p19, %s20, %s21
      %p25 = pneg %p19
      %p26 = scmp.eq.s32.totalorder %s10, 7
      %p27 = por %p25, %p26
      %p28 = scmp.ne.s32.totalorder %s20, %s23
      %p29 = scmp.eq.s32.totalorder %s10, 0
      %p30 = por %p28, %p29
      %p31 = scmp.ne.s32.totalorder %s20, %s23
      %p32 = scmp.eq.s32.totalorder %s15, 7
      %p33 = por %p31, %p32
      %p34 = scmp.ne.s32.totalorder %s23, %s24
      %p35 = scmp.eq.s32.totalorder %s15, 0
      %p36 = por %p34, %p35
      %p37 = scmp.ne.s32.totalorder %s23, %s24
      %p38 = scmp.eq.s32.totalorder %s16, 7
      %p39 = por %p37, %p38
      %p41 = scmp.ne.s32.totalorder %s24, %s40
      %p42 = scmp.eq.s32.totalorder %s16, 0
      %p43 = por %p41, %p42
      %s44 = ssub.s32 %s10, %s17
      %p45 = scmp.eq.s32.totalorder %s44, 0
      %s47 = sadd.s32 %s46, 1
      %s48 = scalar_select %p45, %s46, %s47
      %p51 = pneg %p45
      %p52 = scmp.eq.s32.totalorder %s10, 7
      %p53 = por %p51, %p52
      %p54 = scmp.ne.s32.totalorder %s46, %s49
      %p55 = scmp.eq.s32.totalorder %s10, 0
      %p56 = por %p54, %p55
      %p57 = scmp.ne.s32.totalorder %s46, %s49
      %p58 = scmp.eq.s32.totalorder %s15, 7
      %p59 = por %p57, %p58
      %p60 = scmp.ne.s32.totalorder %s49, %s50
      %p61 = scmp.eq.s32.totalorder %s15, 0
      %p62 = por %p60, %p61
      %p63 = scmp.ne.s32.totalorder %s49, %s50
      %p64 = scmp.eq.s32.totalorder %s16, 7
      %p65 = por %p63, %p64
      %p67 = scmp.ne.s32.totalorder %s50, %s66
      %p68 = scmp.eq.s32.totalorder %s16, 0
      %p69 = por %p67, %p68
      %p70 = scmp.le.s32.totalorder 1, %s10
      %p71 = scmp.lt.s32.totalorder %s10, 9
      %p72 = pnand %p70, %p71
      %p73 = pneg %p72
      // Predicated region
      $region9: #{tpu_custom_call.1} parent=5 // pred_check
        _
      $region10: #{tpu_custom_call.1} parent=5 // pred_check_branch
        %75 = sbr.rel (%p72) target = $region12
      $region11: #{tpu_custom_call.1} parent=5 // pred_region
        %s76 = ssub.s32 %s10, 1
      $region12: #{tpu_custom_call.1} parent=5 // pred_fallthru
        _
      %p77 = scmp.lt.s32.totalorder %s10, 8
      // Predicated region
      $region13: #{tpu_custom_call.1} parent=5 // pred_check
        %p78 = pneg %p77
      $region14: #{tpu_custom_call.1} parent=5 // pred_check_branch
        %80 = sbr.rel (%p78) target = $region16
      $region15: #{tpu_custom_call.1} parent=5 // pred_region
        // Predicated region
        $region17: #{tpu_custom_call.1} parent=15 // pred_check
          %p81 = pneg %p30
        $region18: #{tpu_custom_call.1} parent=15 // pred_check_branch
          %83 = sbr.rel (%p81) target = $region20
        $region19: #{tpu_custom_call.1} parent=15 // pred_region
          %s84 = sand.u32 %s20, 1
          %s85 = scalar_lea.sflag [#allocation4], %s84
          %s86 = sand.u32 %s20, 1
          %s87 = smul.addr %s86, 16
          %s88 = scalar_lea.vmem [#allocation3], %s87
          %90 = vsyncadd %s85, 0
          %s91 = smul.addr %s10, 2
          %s92 = smul.addr %s91, 8
          %s93 = scalar_lea.hbm %s0, %s92
          %s94 = sshll.u32 %s93, 4
          %s95 = int_to_ptr.hbm [resolvable:$true] %s94
          %s96 = sshll.u32 %s88, 4
          %s97 = int_to_ptr.vmem [resolvable:$true] %s96
          %102 = dma.hbm_to_vmem [thread:$0]  %s95, 256, %s97, %s85, 128, 128, 8
        $region20: #{tpu_custom_call.1} parent=15 // pred_fallthru
          _
      $region16: #{tpu_custom_call.1} parent=5 // pred_fallthru
        _
      %p103 = scmp.le.s32.totalorder 1, %s10
      %p104 = scmp.lt.s32.totalorder %s10, 9
      %p105 = pnand %p103, %p104
      %p106 = pneg %p105
      // Predicated region
      $region21: #{tpu_custom_call.1} parent=5 // pred_check
        _
      $region22: #{tpu_custom_call.1} parent=5 // pred_check_branch
        %108 = sbr.rel (%p105) target = $region24
      $region23: #{tpu_custom_call.1} parent=5 // pred_region
        %s109 = ssub.s32 %s10, 1
        %s110 = sand.u32 %s23, 1
        %s111 = scalar_lea.sflag [#allocation4], %s110
        %s112 = sand.u32 %s23, 1
        %s113 = smul.addr %s112, 16
        %s114 = scalar_lea.vmem [#allocation3], %s113
        // Predicated region
        $region25: #{tpu_custom_call.1} parent=23 // pred_check
          %p115 = pneg %p36
        $region26: #{tpu_custom_call.1} parent=23 // pred_check_branch
          %117 = sbr.rel (%p115) target = $region28
        $region27: #{tpu_custom_call.1} parent=23 // pred_region
          %119 = dma.done %s111, 256
        $region28: #{tpu_custom_call.1} parent=23 // pred_fallthru
          _
        %s120 = sand.u32 %s23, 1
        %s121 = scalar_lea.sflag [#allocation4], %s120
        %s122 = sand.u32 %s23, 1
        %s123 = smul.addr %s122, 16
        %s124 = scalar_lea.vmem [#allocation3], %s123
        %p125 = pneg %p36
        %p126 = pneg %p33
        %p127 = pneg %p62
        %p128 = pneg %p59
        %p129 = scmp.lt.s32.totalorder %s15, 7
        %s130 = scalar_select %p129, %s15, 7
        %s131 = smul.addr %s130, 2
        %s132 = smul.addr %s131, 8
        %s133 = scalar_lea.vmem %s1, %s132
        %p134 = scmp.lt.s32.totalorder %s15, 7
        %s135 = scalar_select %p134, %s15, 7
        %s136 = smul.addr %s135, 2
        %s137 = smul.addr %s136, 8
        %s138 = scalar_lea.vmem %s1, %s137
        %v139 = vld [vmem:[%s114] sm:$0xff]
        %v140 = vld [vmem:[%s114 + $0x8] sm:$0xff]
        %v141 = vmul.f32 %v139, 0.054488685
        %v142 = vmul.f32 %v140, 0.054488685
        %v143 = vmul.f32 %v139, 0.24420135
        %v144 = vmul.f32 %v140, 0.24420135
        %147 = vrot.lane.b32.xlu0 %v143, 127
        %v148 = vpop.permute.xlu0 %147
        %149 = vrot.lane.b32.xlu0 %v144, 127
        %v150 = vpop.permute.xlu0 %149
        %v153 = vadd.f32 %v141, %v148
        %v154 = vadd.f32 %v142, %v150
        %v155 = vmul.f32 %v139, 0.40261996
        %v156 = vmul.f32 %v140, 0.40261996
        %159 = vrot.lane.b32.xlu0 %v155, 126
        %v160 = vpop.permute.xlu0 %159
        %161 = vrot.lane.b32.xlu0 %v156, 126
        %v162 = vpop.permute.xlu0 %161
        %v165 = vadd.f32 %v153, %v160
        %v166 = vadd.f32 %v154, %v162
        %167 = vrot.lane.b32.xlu0 %v143, 125
        %v168 = vpop.permute.xlu0 %167
        %169 = vrot.lane.b32.xlu0 %v144, 125
        %v170 = vpop.permute.xlu0 %169
        %v173 = vadd.f32 %v165, %v168
        %v174 = vadd.f32 %v166, %v170
        %177 = vrot.lane.b32.xlu0 %v141, 124
        %v178 = vpop.permute.xlu0 %177
        %179 = vrot.lane.b32.xlu0 %v142, 124
        %v180 = vpop.permute.xlu0 %179
        %v183 = vadd.f32 %v173, %v178
        %v184 = vadd.f32 %v174, %v180
        %vm185 = vcmask 97280
        %186 = vst.msk [vmem:[#allocation2] sm:$0xff] %vm185, %v183
        %187 = vst.msk [vmem:[#allocation2 + $0x8] sm:$0xff] %vm185, %v184
        %v188 = vld [vmem:[#allocation2] sm:$0xff]
        %v189 = vld [vmem:[#allocation2 + $0x8] sm:$0xf]
        %v190 = vmul.f32 %v188, 0.054488685
        %v191 = vmul.f32 %v189, 0.054488685
        %v192 = vld [vmem:[#allocation2 + $0x1] sm:$0xff]
        %v193 = vld [vmem:[#allocation2 + $0x9] sm:$0xf]
        %v194 = vmul.f32 %v192, 0.24420135
        %v195 = vmul.f32 %v193, 0.24420135
        %v196 = vadd.f32 %v190, %v194
        %v197 = vadd.f32 %v191, %v195
        %v198 = vld [vmem:[#allocation2 + $0x2] sm:$0xff]
        %v199 = vld [vmem:[#allocation2 + $0xa] sm:$0xf]
        %v200 = vmul.f32 %v198, 0.40261996
        %v201 = vmul.f32 %v199, 0.40261996
        %v202 = vadd.f32 %v196, %v200
        %v203 = vadd.f32 %v197, %v201
        %v204 = vld [vmem:[#allocation2 + $0x3] sm:$0xff]
        %v205 = vld [vmem:[#allocation2 + $0xb] sm:$0xf]
        %v206 = vmul.f32 %v204, 0.24420135
        %v207 = vmul.f32 %v205, 0.24420135
        %v208 = vadd.f32 %v202, %v206
        %v209 = vadd.f32 %v203, %v207
        %v210 = vld [vmem:[#allocation2 + $0x4] sm:$0xff]
        %v211 = vld [vmem:[#allocation2 + $0xc] sm:$0xf]
        %v212 = vmul.f32 %v210, 0.054488685
        %v213 = vmul.f32 %v211, 0.054488685
        %v214 = vadd.f32 %v208, %v212
        %v215 = vadd.f32 %v209, %v213
        %216 = vst.msk [vmem:[%s138] sm:$0xff] %vm185, %v214
        %vm217 = vcmask 93184
        %218 = vst.msk [vmem:[%s138 + $0x8] sm:$0xf] %vm217, %v215
        %p219 = scmp.lt.s32.totalorder %s15, 7
        %s220 = scalar_select %p219, %s15, 7
        %s221 = smul.addr %s220, 2
        %s222 = smul.addr %s221, 8
        %s223 = scalar_lea.vmem %s1, %s222
        // Predicated region
        $region29: #{tpu_custom_call.1} parent=23 // pred_check
          %p224 = pneg %p59
        $region30: #{tpu_custom_call.1} parent=23 // pred_check_branch
          %226 = sbr.rel (%p224) target = $region32
        $region31: #{tpu_custom_call.1} parent=23 // pred_region
          _
        $region32: #{tpu_custom_call.1} parent=23 // pred_fallthru
          _
      $region24: #{tpu_custom_call.1} parent=5 // pred_fallthru
        _
      %p227 = scmp.le.s32.totalorder 2, %s10
      // Predicated region
      $region33: #{tpu_custom_call.1} parent=5 // pred_check
        %p228 = pneg %p227
      $region34: #{tpu_custom_call.1} parent=5 // pred_check_branch
        %230 = sbr.rel (%p228) target = $region36
      $region35: #{tpu_custom_call.1} parent=5 // pred_region
        %s231 = ssub.s32 %s10, 2
        // Predicated region
        $region37: #{tpu_custom_call.1} parent=35 // pred_check
          %p232 = pneg %p65
        $region38: #{tpu_custom_call.1} parent=35 // pred_check_branch
          %234 = sbr.rel (%p232) target = $region40
        $region39: #{tpu_custom_call.1} parent=35 // pred_region
          %p235 = scmp.lt.s32.totalorder %s16, 7
          %s236 = scalar_select %p235, %s16, 7
          %s237 = smul.addr %s236, 2
          %s238 = smul.addr %s237, 8
          %s239 = scalar_lea.vmem %s1, %s238
        $region40: #{tpu_custom_call.1} parent=35 // pred_fallthru
          _
      $region36: #{tpu_custom_call.1} parent=5 // pred_fallthru
        _
    $region6: #{tpu_custom_call.1} parent=1 // loop_footer
      %s14 = sadd.s32 1, %s10
    $region7: #{tpu_custom_call.1} parent=1 // loop_footer_branch
      %9 = sbr.rel target = $region3
    $region8: #{tpu_custom_call.1} parent=1 // loop_exit
      _
    %240 = vsyncpa [#allocation4], 1
    %s241 = scalar_lea.sflag [#allocation4], 1
    %242 = vsyncpa %s241, 1

</llo_original>
